<compile_context>
chip_gen: v7x
topology: tpu7x:2x2x1
jax: 0.10.0
libtpu: 0.0.40
codegen_flags: <defaults>
</compile_context>

<pallas_src>
import functools

import jax
import jax.numpy as jnp
from jax.experimental import pallas as pl
from jax.experimental.pallas import tpu as pltpu


EPS = 1e-10
_LANES = 128


def _soft_avu_kernel(logits_ref, labels_ref, numer_ref, denom_ref, *,
                     inv_temp, k, inv_c, num_classes, n_valid,
                     samples_per_tile, needs_mask):
    logits = logits_ref[...].astype(jnp.float32)        # (C, TB, 128)
    labels = labels_ref[...]                            # (TB, 128) int32
    _, tb, lanes = logits.shape

    # ---- softmax statistics (probs never materialized) ----------------------
    m = jnp.max(logits, axis=0, keepdims=True)           # (1, TB, 128)  VALU tree
    x = logits - m                                       # (C, TB, 128), <= 0
    e = jnp.exp(x)                                       # only (N,C)-sized EUP op
    s = jnp.sum(e, axis=0)                               # (TB, 128)     VALU tree
    ex = jnp.sum(e * x, axis=0)                          # (TB, 128)
    # entropy of softmax, algebraically: H = log(S) - sum(e*x)/S  (>= 0)
    ent = jnp.log(s) - ex / s                            # (TB, 128)

    # argmax over classes straight on the logits (softmax is monotone);
    # min-of-indices among maxima matches torch.max's first-occurrence rule.
    cls = jax.lax.broadcasted_iota(jnp.int32, logits.shape, 0)
    pred = jnp.min(jnp.where(logits == m, cls, num_classes), axis=0)  # (TB,128)

    # ---- soft uncertainty / tanh gating --------------------------------------
    ent_norm = ent * inv_c
    u = jax.nn.sigmoid(
        inv_temp * jnp.log((ent_norm * (1.0 - k)) / ((1.0 - ent_norm) * k)))
    t = jnp.tanh(ent)
    certain = (1.0 - u) * (1.0 - t)
    uncertain = u * t
    correct = labels == pred

    # numer = n_ac + n_iu ; denom = n_ac + n_au + n_ic + n_iu
    numer = jnp.where(correct, certain, uncertain)        # (TB, 128)
    denom = certain + uncertain                           # (TB, 128)

    if needs_mask:
        # Select (not multiply): padded / OOB samples may hold arbitrary bits
        # and 0 * NaN would otherwise poison the partial sums.
        base = pl.program_id(0) * samples_per_tile
        plane = jax.lax.broadcasted_iota(jnp.int32, (tb, lanes), 0)
        lane = jax.lax.broadcasted_iota(jnp.int32, (tb, lanes), 1)
        valid = (base + plane * lanes + lane) < n_valid
        numer = jnp.where(valid, numer, 0.0)
        denom = jnp.where(valid, denom, 0.0)

    # Lane-dense (1, 128) partials: one cheap cross-sublane add per tile, the
    # final reduction to a scalar happens in the wrapper.
    numer_ref[...] = jnp.sum(numer, axis=0).reshape(1, 1, lanes)
    denom_ref[...] = jnp.sum(denom, axis=0).reshape(1, 1, lanes)


def _choose_tile(n, c, max_tile_bytes):
    """Pick TB (128-sample planes per tile) sized purely by a byte budget.

    The budget is in f32-equivalent bytes so the in-kernel f32 working set
    stays bounded regardless of the input dtype.
    """
    nb = pl.cdiv(n, _LANES)                       # number of 128-sample planes
    planes = max(1, max_tile_bytes // (c * 4 * _LANES))
    if planes >= nb:
        tb = nb                                   # single tile == full extent
    else:
        tb = max(8, (planes // 8) * 8)            # keep sublane (8) alignment
        tb = min(tb, nb)
    return tb, nb


def soft_avu_loss(logits, labels, *, temp, k, max_tile_bytes=4 * 1024 * 1024):
    """logits: (N, C) float; labels: (N,) int.  Returns (1,) float32 loss."""
    n, c = logits.shape
    itemsize = jnp.dtype(logits.dtype).itemsize
    tb, nb = _choose_tile(n, c, max_tile_bytes)
    n_pad = nb * _LANES
    num_tiles = pl.cdiv(nb, tb)
    samples_per_tile = tb * _LANES
    needs_mask = (n % samples_per_tile) != 0

    # One fused pad+transpose copy; the reshape to (C, NB, 128) is free
    # metadata.  If the producer can emit logits as (C, N) directly this copy
    # disappears entirely (then only the reshape is needed).
    labels_i = labels.astype(jnp.int32)
    logits_p = logits
    if n_pad != n:
        logits_p = jnp.pad(logits_p, ((0, n_pad - n), (0, 0)))
        labels_i = jnp.pad(labels_i, (0, n_pad - n), constant_values=-1)
    logits_cbl = logits_p.T.reshape(c, nb, _LANES)       # (C, NB, 128)
    labels_bl = labels_i.reshape(nb, _LANES)             # (NB, 128)

    kernel = functools.partial(
        _soft_avu_kernel,
        inv_temp=1.0 / float(temp),
        k=float(k),
        inv_c=1.0 / float(c),
        num_classes=c,
        n_valid=n,
        samples_per_tile=samples_per_tile,
        needs_mask=needs_mask,
    )

    # Scoped-VMEM limit: double-buffered I/O plus headroom for the f32
    # temporaries of one tile.  >= 32 MiB covers v5e's 16 MiB scoped default;
    # the default tile budget keeps this well under v7x's 64 MiB VMEM.
    logits_tile_bytes = c * tb * _LANES * itemsize
    labels_tile_bytes = tb * _LANES * 4
    tile_f32_bytes = c * tb * _LANES * 4
    vmem_limit = max(
        32 * 1024 * 1024,
        min(56 * 1024 * 1024,
            2 * (logits_tile_bytes + labels_tile_bytes)
            + 6 * tile_f32_bytes + 2 * 1024 * 1024))

    numer_p, denom_p = pl.pallas_call(
        kernel,
        out_shape=(
            jax.ShapeDtypeStruct((num_tiles, 1, _LANES), jnp.float32),
            jax.ShapeDtypeStruct((num_tiles, 1, _LANES), jnp.float32),
        ),
        grid=(num_tiles,),
        in_specs=[
            pl.BlockSpec((c, tb, _LANES), lambda i: (0, i, 0)),   # logits
            pl.BlockSpec((tb, _LANES), lambda i: (i, 0)),         # labels
        ],
        out_specs=(
            pl.BlockSpec((1, 1, _LANES), lambda i: (i, 0, 0)),    # numer part.
            pl.BlockSpec((1, 1, _LANES), lambda i: (i, 0, 0)),    # denom part.
        ),
        compiler_params=pltpu.CompilerParams(
            dimension_semantics=("parallel",),   # v7x: both TensorCores work
            vmem_limit_bytes=vmem_limit,
        ),
    )(logits_cbl, labels_bl)

    numer = jnp.sum(numer_p)
    denom = jnp.sum(denom_p)
    avu = numer / (denom + EPS)
    return (-jnp.log(avu + EPS)).reshape(1)      # match PyTorch's (1,) output


def _reference_loss(logits, labels, *, temp, k):
    """Pure-JAX mirror of the PyTorch forward, for a correctness gate."""
    logits = logits.astype(jnp.float32)
    _, c = logits.shape
    probs = jax.nn.softmax(logits, axis=1)
    ent = -jnp.sum(probs * jnp.log(probs + EPS), axis=-1)
    pred = jnp.argmax(probs, axis=-1)
    ent_norm = ent / c
    u = jax.nn.sigmoid(
        (1.0 / temp) * jnp.log((ent_norm * (1.0 - k)) / ((1.0 - ent_norm) * k)))
    t = jnp.tanh(ent)
    certain = (1.0 - u) * (1.0 - t)
    uncertain = u * t
    correct = labels.astype(jnp.int32) == pred.astype(jnp.int32)
    n_ac = jnp.sum(jnp.where(correct, certain, 0.0))
    n_au = jnp.sum(jnp.where(correct, uncertain, 0.0))
    n_ic = jnp.sum(jnp.where(correct, 0.0, certain))
    n_iu = jnp.sum(jnp.where(correct, 0.0, uncertain))
    avu = (n_ac + n_iu) / (n_ac + n_au + n_ic + n_iu + EPS)
    return -jnp.log(avu + EPS)


if __name__ == "__main__":
    # Deterministic "module parameters" (SoftAvULoss(temp, k) ctor args).
    TEMP = 0.5
    K = 0.7

    key = jax.random.PRNGKey(0)
    k1, k2, k3, k4 = jax.random.split(key, 4)

    # Case 1: small shape consistent with the module (N=8 samples, C=16).
    logits = jax.random.normal(k1, (8, 16), dtype=jnp.float32)
    labels = jax.random.randint(k2, (8,), 0, 16, dtype=jnp.int32)
    loss = soft_avu_loss(logits, labels, temp=TEMP, k=K)
    jax.block_until_ready(loss)
    ref = _reference_loss(logits, labels, temp=TEMP, k=K)
    if not bool(jnp.allclose(loss[0], ref, rtol=1e-4, atol=1e-4)):
        raise AssertionError(f"case1 mismatch: kernel={loss[0]} ref={ref}")

    # Case 2: multi-tile + ragged tail (forces tiny tiles to exercise the
    # parallel partials, zero padding and the OOB-garbage masking path).
    logits2 = jax.random.normal(k3, (2300, 8), dtype=jnp.float32)
    labels2 = jax.random.randint(k4, (2300,), 0, 8, dtype=jnp.int32)
    loss2 = soft_avu_loss(logits2, labels2, temp=TEMP, k=K, max_tile_bytes=8192)
    jax.block_until_ready(loss2)
    ref2 = _reference_loss(logits2, labels2, temp=TEMP, k=K)
    if not bool(jnp.allclose(loss2[0], ref2, rtol=1e-4, atol=1e-4)):
        raise AssertionError(f"case2 mismatch: kernel={loss2[0]} ref={ref2}")

    print("KERNEL_OK")
</pallas_src>

<mosaic_0001>
module attributes {stable_mosaic.version = 11 : i64} {
  func.func @_soft_avu_kernel(%arg0: i32, %arg1: memref<16x1x128xf32, #tpu.memory_space<vmem>>, %arg2: memref<1x128xi32, #tpu.memory_space<vmem>>, %arg3: memref<1x1x128xf32, #tpu.memory_space<vmem>>, %arg4: memref<1x1x128xf32, #tpu.memory_space<vmem>>) attributes {dimension_semantics = [#tpu.dimension_semantics<parallel>], iteration_bounds = array<i64: 1>, scalar_prefetch = 0 : i64, scratch_operands = 0 : i64, tpu.core_type = #tpu.core_type<tc>, window_params = [{transform_indices = @transform_0, window_bounds = array<i64: 16, 1, 128>}, {transform_indices = @transform_1, window_bounds = array<i64: 1, 128>}, {transform_indices = @transform_2, window_bounds = array<i64: 1, 1, 128>}, {transform_indices = @transform_3, window_bounds = array<i64: 1, 1, 128>}]} {
    %c0 = arith.constant 0 : index
    %c0_0 = arith.constant 0 : index
    %c0_1 = arith.constant 0 : index
    %0 = vector.load %arg1[%c0, %c0_0, %c0_1] : memref<16x1x128xf32, #tpu.memory_space<vmem>>, vector<16x1x128xf32>
    %c0_2 = arith.constant 0 : index
    %c0_3 = arith.constant 0 : index
    %1 = vector.load %arg2[%c0_2, %c0_3] : memref<1x128xi32, #tpu.memory_space<vmem>>, vector<1x128xi32>
    %cst = arith.constant dense<0xFF800000> : vector<1x128xf32>
    %2 = vector.multi_reduction <maximumf>, %0, %cst [0] : vector<16x1x128xf32> to vector<1x128xf32>
    %3 = vector.shape_cast %2 : vector<1x128xf32> to vector<1x1x128xf32>
    %4 = vector.broadcast %3 : vector<1x1x128xf32> to vector<16x1x128xf32>
    %5 = arith.subf %0, %4 : vector<16x1x128xf32>
    %6 = math.exp %5 : vector<16x1x128xf32>
    %cst_4 = arith.constant dense<0.000000e+00> : vector<1x128xf32>
    %7 = vector.multi_reduction <add>, %6, %cst_4 [0] : vector<16x1x128xf32> to vector<1x128xf32>
    %8 = arith.mulf %6, %5 : vector<16x1x128xf32>
    %cst_5 = arith.constant dense<0.000000e+00> : vector<1x128xf32>
    %9 = vector.multi_reduction <add>, %8, %cst_5 [0] : vector<16x1x128xf32> to vector<1x128xf32>
    %10 = math.log %7 : vector<1x128xf32>
    %11 = arith.divf %9, %7 : vector<1x128xf32>
    %12 = arith.subf %10, %11 : vector<1x128xf32>
    %13 = tpu.iota {dimensions = array<i32: 0>} : vector<16x1x128xi32>
    %14 = vector.broadcast %3 : vector<1x1x128xf32> to vector<16x1x128xf32>
    %15 = arith.cmpf oeq, %0, %14 : vector<16x1x128xf32>
    %c16_i32 = arith.constant 16 : i32
    %16 = vector.broadcast %c16_i32 : i32 to vector<16x1x128xi32>
    %17 = arith.select %15, %13, %16 : vector<16x1x128xi1>, vector<16x1x128xi32>
    %cst_6 = arith.constant dense<2147483647> : vector<1x128xi32>
    %18 = vector.multi_reduction <minsi>, %17, %cst_6 [0] : vector<16x1x128xi32> to vector<1x128xi32>
    %cst_7 = arith.constant 6.250000e-02 : f32
    %19 = vector.broadcast %cst_7 : f32 to vector<1x128xf32>
    %20 = arith.mulf %12, %19 : vector<1x128xf32>
    %cst_8 = arith.constant 3.000000e-01 : f32
    %21 = vector.broadcast %cst_8 : f32 to vector<1x128xf32>
    %22 = arith.mulf %20, %21 : vector<1x128xf32>
    %cst_9 = arith.constant 1.000000e+00 : f32
    %23 = vector.broadcast %cst_9 : f32 to vector<1x128xf32>
    %24 = arith.subf %23, %20 : vector<1x128xf32>
    %cst_10 = arith.constant 0.699999988 : f32
    %25 = vector.broadcast %cst_10 : f32 to vector<1x128xf32>
    %26 = arith.mulf %24, %25 : vector<1x128xf32>
    %27 = arith.divf %22, %26 : vector<1x128xf32>
    %28 = math.log %27 : vector<1x128xf32>
    %cst_11 = arith.constant 2.000000e+00 : f32
    %29 = vector.broadcast %cst_11 : f32 to vector<1x128xf32>
    %30 = arith.mulf %29, %28 : vector<1x128xf32>
    %31 = arith.negf %30 : vector<1x128xf32>
    %32 = math.exp %31 : vector<1x128xf32>
    %cst_12 = arith.constant 1.000000e+00 : f32
    %33 = vector.broadcast %cst_12 : f32 to vector<1x128xf32>
    %34 = arith.addf %33, %32 : vector<1x128xf32>
    %35 = arith.divf %33, %34 : vector<1x128xf32>
    %36 = math.tanh %12 : vector<1x128xf32>
    %cst_13 = arith.constant 1.000000e+00 : f32
    %37 = vector.broadcast %cst_13 : f32 to vector<1x128xf32>
    %38 = arith.subf %37, %35 : vector<1x128xf32>
    %cst_14 = arith.constant 1.000000e+00 : f32
    %39 = vector.broadcast %cst_14 : f32 to vector<1x128xf32>
    %40 = arith.subf %39, %36 : vector<1x128xf32>
    %41 = arith.mulf %38, %40 : vector<1x128xf32>
    %42 = arith.mulf %35, %36 : vector<1x128xf32>
    %43 = arith.cmpi eq, %1, %18 : vector<1x128xi32>
    %44 = arith.select %43, %41, %42 : vector<1x128xi1>, vector<1x128xf32>
    %45 = arith.addf %41, %42 : vector<1x128xf32>
    %c128_i32 = arith.constant 128 : i32
    %46 = arith.muli %arg0, %c128_i32 : i32
    %47 = tpu.iota {dimensions = array<i32: 0>} : vector<1x128xi32>
    %48 = tpu.iota {dimensions = array<i32: 1>} : vector<1x128xi32>
    %c128_i32_15 = arith.constant 128 : i32
    %49 = vector.broadcast %c128_i32_15 : i32 to vector<1x128xi32>
    %50 = arith.muli %47, %49 : vector<1x128xi32>
    %51 = vector.broadcast %46 : i32 to vector<1x128xi32>
    %52 = arith.addi %51, %50 : vector<1x128xi32>
    %53 = arith.addi %52, %48 : vector<1x128xi32>
    %c8_i32 = arith.constant 8 : i32
    %54 = vector.broadcast %c8_i32 : i32 to vector<1x128xi32>
    %55 = arith.cmpi slt, %53, %54 : vector<1x128xi32>
    %cst_16 = arith.constant 0.000000e+00 : f32
    %56 = vector.broadcast %cst_16 : f32 to vector<1x128xf32>
    %57 = arith.select %55, %44, %56 : vector<1x128xi1>, vector<1x128xf32>
    %cst_17 = arith.constant 0.000000e+00 : f32
    %58 = vector.broadcast %cst_17 : f32 to vector<1x128xf32>
    %59 = arith.select %55, %45, %58 : vector<1x128xi1>, vector<1x128xf32>
    %cst_18 = arith.constant dense<0.000000e+00> : vector<128xf32>
    %60 = vector.multi_reduction <add>, %57, %cst_18 [0] : vector<1x128xf32> to vector<128xf32>
    %61 = vector.shape_cast %60 : vector<128xf32> to vector<1x1x128xf32>
    %c0_19 = arith.constant 0 : index
    %c0_20 = arith.constant 0 : index
    %c0_21 = arith.constant 0 : index
    %62 = vector.load %arg3[%c0_19, %c0_20, %c0_21] : memref<1x1x128xf32, #tpu.memory_space<vmem>>, vector<1x1x128xf32>
    tpu.vector_store %arg3[%c0_19, %c0_20, %c0_21], %61 {strides = array<i32>} : memref<1x1x128xf32, #tpu.memory_space<vmem>>, vector<1x1x128xf32>,
    %cst_22 = arith.constant dense<0.000000e+00> : vector<128xf32>
    %63 = vector.multi_reduction <add>, %59, %cst_22 [0] : vector<1x128xf32> to vector<128xf32>
    %64 = vector.shape_cast %63 : vector<128xf32> to vector<1x1x128xf32>
    %c0_23 = arith.constant 0 : index
    %c0_24 = arith.constant 0 : index
    %c0_25 = arith.constant 0 : index
    %65 = vector.load %arg4[%c0_23, %c0_24, %c0_25] : memref<1x1x128xf32, #tpu.memory_space<vmem>>, vector<1x1x128xf32>
    tpu.vector_store %arg4[%c0_23, %c0_24, %c0_25], %64 {strides = array<i32>} : memref<1x1x128xf32, #tpu.memory_space<vmem>>, vector<1x1x128xf32>,
    return
  }
  func.func @transform_0(%arg0: i32) -> (i32, i32, i32) {
    %c0_i32 = arith.constant 0 : i32
    %c0_i32_0 = arith.constant 0 : i32
    %c0_i32_1 = arith.constant 0 : i32
    return %c0_i32, %arg0, %c0_i32_0 : i32, i32, i32
  }
  func.func @transform_1(%arg0: i32) -> (i32, i32) {
    %c0_i32 = arith.constant 0 : i32
    %c0_i32_0 = arith.constant 0 : i32
    return %arg0, %c0_i32 : i32, i32
  }
  func.func @transform_2(%arg0: i32) -> (i32, i32, i32) {
    %c0_i32 = arith.constant 0 : i32
    %c0_i32_0 = arith.constant 0 : i32
    %c0_i32_1 = arith.constant 0 : i32
    return %arg0, %c0_i32, %c0_i32_0 : i32, i32, i32
  }
  func.func @transform_3(%arg0: i32) -> (i32, i32, i32) {
    %c0_i32 = arith.constant 0 : i32
    %c0_i32_0 = arith.constant 0 : i32
    %c0_i32_1 = arith.constant 0 : i32
    return %arg0, %c0_i32, %c0_i32_0 : i32, i32, i32
  }
}

</mosaic_0001>

<llo_original>
// kernel: tpu_custom_call.1
$region0: #{tpu_custom_call.1}
  #allocation0 [shape = 'u32[]', space=smem, size = 0x4, offset = 0x4, fixed_abs, tag = 'smem constant byte address 0x4 - core index']
  #allocation1 [shape = 'u32[144,128]{1,0:T(1,128)}', space=vmem, size = 0x12000, scoped, tag = 'internal scratch']
  %s0 = inlined_call_operand.hbm [shape: f32[16,1,128], index: 0, kind: input, shape index: {}]
  %s1 = inlined_call_operand.vmem [shape: s32[1,128], index: 1, kind: input, shape index: {}]
  %s2 = inlined_call_operand.hbm [shape: f32[1,1,128], index: 2, kind: output, shape index: {0}]
  %s3 = inlined_call_operand.hbm [shape: f32[1,1,128], index: 3, kind: output, shape index: {1}]
  %4 = xla_tuple %s2, %s3
  %s5 = sld [smem:[#allocation0]]
  $region30: #{tpu_custom_call.1} parent=0
    _
  %s7 = ssub.s32 1, %s5
  %s8 = scalar_select 0, %s7, %s5
  $region1: #{tpu_custom_call.1} parent=0
    #allocation2 [shape = 'u8[8192]{0}', space=vmem, size = 0x2000, scoped, tag = 'input window, operand 0, single buffered']
    #allocation3 [shape = 's32[1]{0}', space=sflag, size = 0x4, scoped, tag = 'scoped memory for tpu_custom_call.1']
    #allocation4 [shape = 's32[1]{0}', space=sflag, size = 0x4, scoped, tag = 'scoped memory for tpu_custom_call.1']
    #allocation5 [shape = 'u8[512]{0}', space=vmem, size = 0x400, scoped, tag = 'output window, operand 0, single buffered']
    #allocation6 [shape = 'u8[512]{0}', space=vmem, size = 0x400, scoped, tag = 'output window, operand 1, single buffered']
    #allocation7 [shape = 's32[1]{0}', space=sflag, size = 0x4, scoped, tag = 'scoped memory for tpu_custom_call.1']
    %9 = vsyncpa [#allocation3], 0
    %10 = vsyncpa [#allocation4], 0
    %11 = vsyncpa [#allocation7], 0
    // Predicated region
    $region2: #{tpu_custom_call.1} parent=1 // pred_check
      _
    $region3: #{tpu_custom_call.1} parent=1 // pred_check_branch
      %13 = sbr.rel (0) target = $region5
    $region4: #{tpu_custom_call.1} parent=1 // pred_region
      %s15 = ssub.s32 256, 256
      %16 = vsyncadd [#allocation3], %s15
      %s17 = sshll.u32 [#allocation2], 4
      %s18 = int_to_ptr.vmem [resolvable:$true] %s17
      %23 = dma.hbm_to_vmem [thread:$0]  %s0, 256, %s18, [#allocation3], 16, 16, 1
    $region5: #{tpu_custom_call.1} parent=1 // pred_fallthru
      _
    // Predicated region
    $region6: #{tpu_custom_call.1} parent=1 // pred_check
      _
    $region7: #{tpu_custom_call.1} parent=1 // pred_check_branch
      %25 = sbr.rel (0) target = $region9
    $region8: #{tpu_custom_call.1} parent=1 // pred_region
      _
    $region9: #{tpu_custom_call.1} parent=1 // pred_fallthru
      _
    // Predicated region
    $region10: #{tpu_custom_call.1} parent=1 // pred_check
      _
    $region11: #{tpu_custom_call.1} parent=1 // pred_check_branch
      %27 = sbr.rel (0) target = $region13
    $region12: #{tpu_custom_call.1} parent=1 // pred_region
      %28 = dma.done [#allocation3], 256
    $region13: #{tpu_custom_call.1} parent=1 // pred_fallthru
      _
    %v29 = vld [vmem:[#allocation2] sm:$0x1]
    %v30 = vld [vmem:[#allocation2 + $0x1] sm:$0x1]
    %v31 = vld [vmem:[#allocation2 + $0x2] sm:$0x1]
    %v32 = vld [vmem:[#allocation2 + $0x3] sm:$0x1]
    %v33 = vld [vmem:[#allocation2 + $0x4] sm:$0x1]
    %v34 = vld [vmem:[#allocation2 + $0x5] sm:$0x1]
    %v35 = vld [vmem:[#allocation2 + $0x6] sm:$0x1]
    %v36 = vld [vmem:[#allocation2 + $0x7] sm:$0x1]
    %v37 = vld [vmem:[#allocation2 + $0x8] sm:$0x1]
    %v38 = vld [vmem:[#allocation2 + $0x9] sm:$0x1]
    %v39 = vld [vmem:[#allocation2 + $0xa] sm:$0x1]
    %v40 = vld [vmem:[#allocation2 + $0xb] sm:$0x1]
    %v41 = vld [vmem:[#allocation2 + $0xc] sm:$0x1]
    %v42 = vld [vmem:[#allocation2 + $0xd] sm:$0x1]
    %v43 = vld [vmem:[#allocation2 + $0xe] sm:$0x1]
    %v44 = vld [vmem:[#allocation2 + $0xf] sm:$0x1]
    %v45 = vld [vmem:[%s1] sm:$0x1]
    %v46 = vlaneseq
    %vm47 = vcmp.ge.s32.totalorder %v46, 0
    %vm48 = vcmp.lt.s32.totalorder %v46, 128
    %vm49 = vmand %vm47, %vm48
    %v50 = vsel %vm49, %v29, -inf
    %v51 = vsel %vm49, %v30, -inf
    %v52 = vsel %vm49, %v31, -inf
    %v53 = vsel %vm49, %v32, -inf
    %v54 = vsel %vm49, %v33, -inf
    %v55 = vmax.f32 %v50, %v54
    %v56 = vsel %vm49, %v34, -inf
    %v57 = vmax.f32 %v51, %v56
    %v58 = vsel %vm49, %v35, -inf
    %v59 = vmax.f32 %v52, %v58
    %v60 = vsel %vm49, %v36, -inf
    %v61 = vmax.f32 %v53, %v60
    %v62 = vsel %vm49, %v37, -inf
    %v63 = vmax.f32 %v55, %v62
    %v64 = vsel %vm49, %v38, -inf
    %v65 = vmax.f32 %v57, %v64
    %v66 = vsel %vm49, %v39, -inf
    %v67 = vmax.f32 %v59, %v66
    %v68 = vsel %vm49, %v40, -inf
    %v69 = vmax.f32 %v61, %v68
    %v70 = vsel %vm49, %v41, -inf
    %v71 = vmax.f32 %v63, %v70
    %v72 = vsel %vm49, %v42, -inf
    %v73 = vmax.f32 %v65, %v72
    %v74 = vsel %vm49, %v43, -inf
    %v75 = vmax.f32 %v67, %v74
    %v76 = vsel %vm49, %v44, -inf
    %v77 = vmax.f32 %v69, %v76
    %v78 = vmax.f32 %v71, %v73
    %v79 = vmax.f32 %v75, %v77
    %v80 = vmax.f32 %v78, %v79
    %v81 = vsub.f32 %v29, %v80
    %v82 = vsub.f32 %v30, %v80
    %v83 = vsub.f32 %v31, %v80
    %v84 = vsub.f32 %v32, %v80
    %v85 = vsub.f32 %v33, %v80
    %v86 = vsub.f32 %v34, %v80
    %v87 = vsub.f32 %v35, %v80
    %v88 = vsub.f32 %v36, %v80
    %v89 = vsub.f32 %v37, %v80
    %v90 = vsub.f32 %v38, %v80
    %v91 = vsub.f32 %v39, %v80
    %v92 = vsub.f32 %v40, %v80
    %v93 = vsub.f32 %v41, %v80
    %v94 = vsub.f32 %v42, %v80
    %v95 = vsub.f32 %v43, %v80
    %v96 = vsub.f32 %v44, %v80
    %v97 = vmul.f32 %v81, 1.442695
    %v98 = vpow.pop %v97
    %v99 = vmul.f32 %v82, 1.442695
    %v100 = vpow.pop %v99
    %v101 = vmul.f32 %v83, 1.442695
    %v102 = vpow.pop %v101
    %v103 = vmul.f32 %v84, 1.442695
    %v104 = vpow.pop %v103
    %v105 = vmul.f32 %v85, 1.442695
    %v106 = vpow.pop %v105
    %v107 = vmul.f32 %v86, 1.442695
    %v108 = vpow.pop %v107
    %v109 = vmul.f32 %v87, 1.442695
    %v110 = vpow.pop %v109
    %v111 = vmul.f32 %v88, 1.442695
    %v112 = vpow.pop %v111
    %v113 = vmul.f32 %v89, 1.442695
    %v114 = vpow.pop %v113
    %v115 = vmul.f32 %v90, 1.442695
    %v116 = vpow.pop %v115
    %v117 = vmul.f32 %v91, 1.442695
    %v118 = vpow.pop %v117
    %v119 = vmul.f32 %v92, 1.442695
    %v120 = vpow.pop %v119
    %v121 = vmul.f32 %v93, 1.442695
    %v122 = vpow.pop %v121
    %v123 = vmul.f32 %v94, 1.442695
    %v124 = vpow.pop %v123
    %v125 = vmul.f32 %v95, 1.442695
    %v126 = vpow.pop %v125
    %v127 = vmul.f32 %v96, 1.442695
    %v128 = vpow.pop %v127
    %vm129 = vcmask 1040384
    %v130 = vsel %vm129, %v98, 0.0
    %v131 = vsel %vm129, %v100, 0.0
    %v132 = vadd.f32 %v130, %v131
    %v133 = vsel %vm129, %v102, 0.0
    %v134 = vadd.f32 %v132, %v133
    %v135 = vsel %vm129, %v104, 0.0
    %v136 = vadd.f32 %v134, %v135
    %v137 = vsel %vm129, %v106, 0.0
    %v138 = vadd.f32 %v136, %v137
    %v139 = vsel %vm129, %v108, 0.0
    %v140 = vadd.f32 %v138, %v139
    %v141 = vsel %vm129, %v110, 0.0
    %v142 = vadd.f32 %v140, %v141
    %v143 = vsel %vm129, %v112, 0.0
    %v144 = vadd.f32 %v142, %v143
    %v145 = vsel %vm129, %v114, 0.0
    %v146 = vadd.f32 %v144, %v145
    %v147 = vsel %vm129, %v116, 0.0
    %v148 = vadd.f32 %v146, %v147
    %v149 = vsel %vm129, %v118, 0.0
    %v150 = vadd.f32 %v148, %v149
    %v151 = vsel %vm129, %v120, 0.0
    %v152 = vadd.f32 %v150, %v151
    %v153 = vsel %vm129, %v122, 0.0
    %v154 = vadd.f32 %v152, %v153
    %v155 = vsel %vm129, %v124, 0.0
    %v156 = vadd.f32 %v154, %v155
    %v157 = vsel %vm129, %v126, 0.0
    %v158 = vadd.f32 %v156, %v157
    %v159 = vsel %vm129, %v128, 0.0
    %v160 = vadd.f32 %v158, %v159
    %v161 = vmul.f32 %v98, %v81
    %v162 = vmul.f32 %v100, %v82
    %v163 = vmul.f32 %v102, %v83
    %v164 = vmul.f32 %v104, %v84
    %v165 = vmul.f32 %v106, %v85
    %v166 = vmul.f32 %v108, %v86
    %v167 = vmul.f32 %v110, %v87
    %v168 = vmul.f32 %v112, %v88
    %v169 = vmul.f32 %v114, %v89
    %v170 = vmul.f32 %v116, %v90
    %v171 = vmul.f32 %v118, %v91
    %v172 = vmul.f32 %v120, %v92
    %v173 = vmul.f32 %v122, %v93
    %v174 = vmul.f32 %v124, %v94
    %v175 = vmul.f32 %v126, %v95
    %v176 = vmul.f32 %v128, %v96
    %v177 = vsel %vm129, %v161, 0.0
    %v178 = vsel %vm129, %v162, 0.0
    %v179 = vadd.f32 %v177, %v178
    %v180 = vsel %vm129, %v163, 0.0
    %v181 = vadd.f32 %v179, %v180
    %v182 = vsel %vm129, %v164, 0.0
    %v183 = vadd.f32 %v181, %v182
    %v184 = vsel %vm129, %v165, 0.0
    %v185 = vadd.f32 %v183, %v184
    %v186 = vsel %vm129, %v166, 0.0
    %v187 = vadd.f32 %v185, %v186
    %v188 = vsel %vm129, %v167, 0.0
    %v189 = vadd.f32 %v187, %v188
    %v190 = vsel %vm129, %v168, 0.0
    %v191 = vadd.f32 %v189, %v190
    %v192 = vsel %vm129, %v169, 0.0
    %v193 = vadd.f32 %v191, %v192
    %v194 = vsel %vm129, %v170, 0.0
    %v195 = vadd.f32 %v193, %v194
    %v196 = vsel %vm129, %v171, 0.0
    %v197 = vadd.f32 %v195, %v196
    %v198 = vsel %vm129, %v172, 0.0
    %v199 = vadd.f32 %v197, %v198
    %v200 = vsel %vm129, %v173, 0.0
    %v201 = vadd.f32 %v199, %v200
    %v202 = vsel %vm129, %v174, 0.0
    %v203 = vadd.f32 %v201, %v202
    %v204 = vsel %vm129, %v175, 0.0
    %v205 = vadd.f32 %v203, %v204
    %v206 = vsel %vm129, %v176, 0.0
    %v207 = vadd.f32 %v205, %v206
    %v208 = vlog2.pop %v160
    %v209 = vmul.f32 %v208, 0.6931472
    %v210 = vrcp.pop %v160
    %v211 = vmul.f32 %v207, %v210
    %v212 = vsub.f32 %v209, %v211
    %vm213 = vcmp.eq.f32.partialorder %v29, %v80
    %vm214 = vcmp.eq.f32.partialorder %v30, %v80
    %vm215 = vcmp.eq.f32.partialorder %v31, %v80
    %vm216 = vcmp.eq.f32.partialorder %v32, %v80
    %vm217 = vcmp.eq.f32.partialorder %v33, %v80
    %vm218 = vcmp.eq.f32.partialorder %v34, %v80
    %vm219 = vcmp.eq.f32.partialorder %v35, %v80
    %vm220 = vcmp.eq.f32.partialorder %v36, %v80
    %vm221 = vcmp.eq.f32.partialorder %v37, %v80
    %vm222 = vcmp.eq.f32.partialorder %v38, %v80
    %vm223 = vcmp.eq.f32.partialorder %v39, %v80
    %vm224 = vcmp.eq.f32.partialorder %v40, %v80
    %vm225 = vcmp.eq.f32.partialorder %v41, %v80
    %vm226 = vcmp.eq.f32.partialorder %v42, %v80
    %vm227 = vcmp.eq.f32.partialorder %v43, %v80
    %vm228 = vcmp.eq.f32.partialorder %v44, %v80
    %v229 = vsel %vm213, 0, 16
    %v230 = vsel %vm214, 1, 16
    %v231 = vsel %vm215, 2, 16
    %v232 = vsel %vm216, 3, 16
    %v233 = vsel %vm217, 4, 16
    %v234 = vsel %vm218, 5, 16
    %v235 = vsel %vm219, 6, 16
    %v236 = vsel %vm220, 7, 16
    %v237 = vsel %vm221, 8, 16
    %v238 = vsel %vm222, 9, 16
    %v239 = vsel %vm223, 10, 16
    %v240 = vsel %vm224, 11, 16
    %v241 = vsel %vm225, 12, 16
    %v242 = vsel %vm226, 13, 16
    %v243 = vsel %vm227, 14, 16
    %v244 = vsel %vm228, 15, 16
    %v245 = vsel %vm49, %v229, 2147483647
    %v246 = vsel %vm49, %v230, 2147483647
    %v247 = vsel %vm49, %v231, 2147483647
    %v248 = vsel %vm49, %v232, 2147483647
    %v249 = vsel %vm49, %v233, 2147483647
    %vm250 = vcmp.lt.s32.totalorder %v245, %v249
    %v251 = vsel %vm250, %v245, %v249
    %v252 = vsel %vm49, %v234, 2147483647
    %vm253 = vcmp.lt.s32.totalorder %v246, %v252
    %v254 = vsel %vm253, %v246, %v252
    %v255 = vsel %vm49, %v235, 2147483647
    %vm256 = vcmp.lt.s32.totalorder %v247, %v255
    %v257 = vsel %vm256, %v247, %v255
    %v258 = vsel %vm49, %v236, 2147483647
    %vm259 = vcmp.lt.s32.totalorder %v248, %v258
    %v260 = vsel %vm259, %v248, %v258
    %v261 = vsel %vm49, %v237, 2147483647
    %vm262 = vcmp.lt.s32.totalorder %v251, %v261
    %v263 = vsel %vm262, %v251, %v261
    %v264 = vsel %vm49, %v238, 2147483647
    %vm265 = vcmp.lt.s32.totalorder %v254, %v264
    %v266 = vsel %vm265, %v254, %v264
    %v267 = vsel %vm49, %v239, 2147483647
    %vm268 = vcmp.lt.s32.totalorder %v257, %v267
    %v269 = vsel %vm268, %v257, %v267
    %v270 = vsel %vm49, %v240, 2147483647
    %vm271 = vcmp.lt.s32.totalorder %v260, %v270
    %v272 = vsel %vm271, %v260, %v270
    %v273 = vsel %vm49, %v241, 2147483647
    %vm274 = vcmp.lt.s32.totalorder %v263, %v273
    %v275 = vsel %vm274, %v263, %v273
    %v276 = vsel %vm49, %v242, 2147483647
    %vm277 = vcmp.lt.s32.totalorder %v266, %v276
    %v278 = vsel %vm277, %v266, %v276
    %v279 = vsel %vm49, %v243, 2147483647
    %vm280 = vcmp.lt.s32.totalorder %v269, %v279
    %v281 = vsel %vm280, %v269, %v279
    %v282 = vsel %vm49, %v244, 2147483647
    %vm283 = vcmp.lt.s32.totalorder %v272, %v282
    %v284 = vsel %vm283, %v272, %v282
    %vm285 = vcmp.lt.s32.totalorder %v275, %v278
    %v286 = vsel %vm285, %v275, %v278
    %vm287 = vcmp.lt.s32.totalorder %v281, %v284
    %v288 = vsel %vm287, %v281, %v284
    %vm289 = vcmp.lt.s32.totalorder %v286, %v288
    %v290 = vsel %vm289, %v286, %v288
    %v291 = vmul.f32 %v212, 0.0625
    %v292 = vmul.f32 %v291, 0.3
    %v293 = vsub.f32 1.0, %v291
    %v294 = vmul.f32 %v293, 0.7
    %v295 = vrcp.pop %v294
    %v296 = vmul.f32 %v292, %v295
    %v297 = vlog2.pop %v296
    %v298 = vmul.f32 %v297, 0.6931472
    %v299 = vmul.f32 %v298, 2.0
    %v300 = vxor.u32 %v299, 2147483648
    %v301 = vmul.f32 %v300, 1.442695
    %v302 = vpow.pop %v301
    %v303 = vadd.f32 %v302, 1.0
    %v304 = vrcp.pop %v303
    %v305 = vmul.f32 1.0, %v304
    %v306 = vtanh.pop %v212
    %v307 = vsub.f32 1.0, %v305
    %v308 = vsub.f32 1.0, %v306
    %v309 = vmul.f32 %v307, %v308
    %v310 = vmul.f32 %v305, %v306
    %vm311 = vcmp.eq.s32.totalorder %v45, %v290
    %v312 = vsel %vm311, %v309, %v310
    %v313 = vadd.f32 %v309, %v310
    %s314 = smul.u32 0, 128
    %v315 = vlaneseq
    %v316 = vshrl.u32 %v315, 7
    %v317 = vlaneseq
    %v318 = vand.u32 %v317, 127
    %v319 = vmul.u32 %v316, 128
    %v320 = vstv %s314
    %v321 = vadd.s32 %v320, %v319
    %v322 = vadd.s32 %v321, %v318
    %vm323 = vcmp.lt.s32.totalorder %v322, 8
    %v324 = vsel %vm323, %v312, 0.0
    %v325 = vsel %vm323, %v313, 0.0
    %v326 = vadd.f32 %v324, 0.0
    %327 = vst [vmem:[#allocation5] sm:$0x1] %v326
    %v328 = vadd.f32 %v325, 0.0
    %329 = vst [vmem:[#allocation6] sm:$0x1] %v328
    // Predicated region
    $region14: #{tpu_custom_call.1} parent=1 // pred_check
      _
    $region15: #{tpu_custom_call.1} parent=1 // pred_check_branch
      %331 = sbr.rel (0) target = $region17
    $region16: #{tpu_custom_call.1} parent=1 // pred_region
      %s333 = ssub.s32 16, 16
      %334 = vsyncadd [#allocation4], %s333
      %s336 = sshll.u32 [#allocation5], 4
      %s337 = int_to_ptr.vmem [resolvable:$true] %s336
      %339 = dma.vmem_to_hbm [thread:$0]  %s337, 16, %s2, [#allocation4]
    $region17: #{tpu_custom_call.1} parent=1 // pred_fallthru
      _
    // Predicated region
    $region18: #{tpu_custom_call.1} parent=1 // pred_check
      _
    $region19: #{tpu_custom_call.1} parent=1 // pred_check_branch
      %341 = sbr.rel (0) target = $region21
    $region20: #{tpu_custom_call.1} parent=1 // pred_region
      %s343 = ssub.s32 16, 16
      %344 = vsyncadd [#allocation7], %s343
      %s346 = sshll.u32 [#allocation6], 4
      %s347 = int_to_ptr.vmem [resolvable:$true] %s346
      %349 = dma.vmem_to_hbm [thread:$0]  %s347, 16, %s3, [#allocation7]
    $region21: #{tpu_custom_call.1} parent=1 // pred_fallthru
      _
    // Predicated region
    $region22: #{tpu_custom_call.1} parent=1 // pred_check
      _
    $region23: #{tpu_custom_call.1} parent=1 // pred_check_branch
      %351 = sbr.rel (0) target = $region25
    $region24: #{tpu_custom_call.1} parent=1 // pred_region
      %352 = dma.done [#allocation4], 16
    $region25: #{tpu_custom_call.1} parent=1 // pred_fallthru
      _
    // Predicated region
    $region26: #{tpu_custom_call.1} parent=1 // pred_check
      _
    $region27: #{tpu_custom_call.1} parent=1 // pred_check_branch
      %354 = sbr.rel (0) target = $region29
    $region28: #{tpu_custom_call.1} parent=1 // pred_region
      %355 = dma.done [#allocation7], 16
    $region29: #{tpu_custom_call.1} parent=1 // pred_fallthru
      _
    %356 = vsyncpa [#allocation3], 1
    %357 = vsyncpa [#allocation4], 1
    %358 = vsyncpa [#allocation7], 1

</llo_original>
